<compile_context>
chip_gen: v5e
topology: v5e:2x2
jax: 0.10.0
libtpu: 0.0.40
codegen_flags: <defaults>
</compile_context>

<pallas_src>
import functools
import math

import jax
import jax.numpy as jnp
from jax.experimental import pallas as pl
from jax.experimental.pallas import tpu as pltpu

LANES = 128
_MAX_BLOCK_ROWS = 8192  # ~4 MiB f32 / 2 MiB bf16 per block: past the roofline knee


def _vmem_capacity_bytes():
    # Generation-aware physical VMEM (v5e/v6e: 128 MiB; v7x: 64 MiB per TensorCore).
    try:
        return int(pltpu.get_tpu_info().vmem_capacity_bytes)
    except Exception:
        return 64 * 1024 * 1024  # assume the smallest (v7x) if the query is unavailable


_VMEM_CAP = _vmem_capacity_bytes()


def _sublane_multiple(itemsize):
    # Sub-32-bit dtypes pack along sublanes: f32 -> 8, bf16/fp16 -> 16, int8/fp8 -> 32.
    return max(8, 32 // int(itemsize))


def _choose_block_rows(n, rows, itemsize):
    sub = _sublane_multiple(itemsize)
    # Double-buffered footprint per row of block: (n inputs + 1 output) x 2 buffers.
    per_row_bytes = (n + 1) * 2 * LANES * itemsize
    budget_bytes = int(0.55 * _VMEM_CAP)  # ~35 MiB on v7x, ~70 MiB on v5e/v6e
    br = budget_bytes // per_row_bytes
    br = min(br, _MAX_BLOCK_ROWS)
    # Keep >=4 grid steps when rows allow: pipeline overlap + both v7x TensorCores.
    br = min(br, -(-rows // 4))
    br = max(sub, (br // sub) * sub)
    rows_ceil = -(-rows // sub) * sub
    return min(br, rows_ceil)


def _compiler_params(n, block_rows, itemsize):
    footprint = (n + 1) * 2 * block_rows * LANES * itemsize
    limit = min(int(0.9 * _VMEM_CAP), max(footprint + (4 << 20), 16 << 20))
    return pltpu.CompilerParams(
        dimension_semantics=("parallel",),
        vmem_limit_bytes=limit,
    )


def _sum_kernel_weighted(n, ws_ref, *refs):
    # ws_ref: SMEM (n-1,) float32 weights for x[1..n-1] (x[0] weight is 1.0).
    # refs: n input VMEM tiles + 1 output tile, each (block_rows, LANES).
    o_ref = refs[n]
    acc = refs[0][...].astype(jnp.float32)
    for i in range(1, n):  # n is static -> unrolled at trace time
        acc = acc + refs[i][...].astype(jnp.float32) * ws_ref[i - 1]
    o_ref[...] = acc.astype(o_ref.dtype)


def _sum_kernel_plain(n, *refs):
    o_ref = refs[n]
    acc = refs[0][...].astype(jnp.float32)
    for i in range(1, n):
        acc = acc + refs[i][...].astype(jnp.float32)
    o_ref[...] = acc.astype(o_ref.dtype)


def _sum_2d(xs2d, ws):
    """Sum n lane-dense (rows, 128) slabs (optionally weighted) via one pallas_call."""
    n = len(xs2d)
    rows = xs2d[0].shape[0]
    dtype = xs2d[0].dtype
    itemsize = jnp.dtype(dtype).itemsize
    block_rows = _choose_block_rows(n, rows, itemsize)
    grid = (pl.cdiv(rows, block_rows),)
    out_shape = jax.ShapeDtypeStruct((rows, LANES), dtype)
    cparams = _compiler_params(n, block_rows, itemsize)

    # TODO(synk): optionally sweep pipeline_mode=pl.Buffered(3) on inputs if a
    # profile shows exposed DMA with many streams (kept at default 2 for VMEM headroom).
    if ws is not None:
        idx = lambda i, ws_r: (i, 0)
        return pl.pallas_call(
            functools.partial(_sum_kernel_weighted, n),
            out_shape=out_shape,
            grid_spec=pltpu.PrefetchScalarGridSpec(
                num_scalar_prefetch=1,
                grid=grid,
                in_specs=[pl.BlockSpec((block_rows, LANES), idx) for _ in range(n)],
                out_specs=pl.BlockSpec((block_rows, LANES), idx),
            ),
            compiler_params=cparams,
        )(ws, *xs2d)

    idx = lambda i: (i, 0)
    return pl.pallas_call(
        functools.partial(_sum_kernel_plain, n),
        out_shape=out_shape,
        grid_spec=pltpu.PrefetchScalarGridSpec(
            num_scalar_prefetch=0,
            grid=grid,
            in_specs=[pl.BlockSpec((block_rows, LANES), idx) for _ in range(n)],
            out_specs=pl.BlockSpec((block_rows, LANES), idx),
        ),
        compiler_params=cparams,
    )(*xs2d)


def _sum_pallas_impl(xs, w_param):
    """xs: list of n same-shape arrays. w_param: (n-1,) raw parameter or None."""
    n = len(xs)
    orig_shape = xs[0].shape
    dtype = xs[0].dtype
    m = math.prod(orig_shape)

    if n == 1:
        return xs[0]

    ws = None
    if w_param is not None:
        # Tiny glue: parameter transform on (n-1,) scalars.
        ws = (jax.nn.sigmoid(w_param.astype(jnp.float32)) * 2.0).reshape(n - 1)

    bulk_rows = m // LANES
    tail = m - bulk_rows * LANES

    if tail == 0:
        # Free contiguous reshape to a lane-dense slab (typical conv feature maps).
        xs2d = [x.reshape(bulk_rows, LANES) for x in xs]
        return _sum_2d(xs2d, ws).reshape(orig_shape)

    # Ragged numel: route the 128-aligned bulk through the kernel; handle the
    # <128-element tail with a plain (XLA-fused) add. No full-array pad of inputs.
    xs_flat = [x.reshape(m) for x in xs]
    bulk = bulk_rows * LANES

    bulk_out = None
    if bulk_rows > 0:
        xs2d = [x[:bulk].reshape(bulk_rows, LANES) for x in xs_flat]
        bulk_out = _sum_2d(xs2d, ws).reshape(bulk)

    tails = [x[bulk:] for x in xs_flat]
    tacc = tails[0].astype(jnp.float32)
    for i in range(1, n):
        t = tails[i].astype(jnp.float32)
        tacc = tacc + (t * ws[i - 1] if ws is not None else t)
    tail_out = tacc.astype(dtype)

    flat = tail_out if bulk_out is None else jnp.concatenate([bulk_out, tail_out])
    return flat.reshape(orig_shape)


# jit the wrapper so the (rare) ragged-path slices / tail add / concat fuse in XLA.
sum_pallas = jax.jit(_sum_pallas_impl)


if __name__ == "__main__":
    key = jax.random.PRNGKey(0)
    n = 3
    shape = (2, 4, 16, 16)  # NCHW, numel = 2048 (multiple of 128 -> no-pad path)

    keys = jax.random.split(key, n)
    xs = [jax.random.normal(keys[i], shape, dtype=jnp.float32) for i in range(n)]

    # Deterministic parameter init, same as PyTorch __init__: w = -arange(1, n)/2
    w_param = -jnp.arange(1.0, float(n)) / 2.0  # shape (n-1,)

    # weighted variant (weight=True)
    y_w = sum_pallas(xs, w_param)
    jax.block_until_ready(y_w)
    ww = jax.nn.sigmoid(w_param) * 2.0
    ref_w = xs[0]
    for i in range(n - 1):
        ref_w = ref_w + xs[i + 1] * ww[i]
    assert jnp.allclose(y_w, ref_w, atol=1e-5, rtol=1e-5)

    # unweighted variant (weight=False)
    y_u = sum_pallas(xs, None)
    jax.block_until_ready(y_u)
    ref_u = xs[0]
    for i in range(n - 1):
        ref_u = ref_u + xs[i + 1]
    assert jnp.allclose(y_u, ref_u, atol=1e-5, rtol=1e-5)

    # bf16 inputs exercise the f32-accumulate + cast-on-store path and the
    # 16-sublane block rounding
    xs_bf = [x.astype(jnp.bfloat16) for x in xs]
    y_bf = sum_pallas(xs_bf, w_param)
    jax.block_until_ready(y_bf)
    ref_bf = xs_bf[0].astype(jnp.float32)
    for i in range(n - 1):
        ref_bf = ref_bf + xs_bf[i + 1].astype(jnp.float32) * ww[i]
    assert jnp.allclose(y_bf.astype(jnp.float32), ref_bf, atol=5e-2, rtol=5e-2)

    # ragged shape (numel not a multiple of 128) exercises the bulk + jnp-tail path
    shape_r = (2, 3, 5, 7)
    keys_r = jax.random.split(jax.random.PRNGKey(1), n)
    xr = [jax.random.normal(keys_r[i], shape_r, dtype=jnp.float32) for i in range(n)]
    y_r = sum_pallas(xr, None)
    jax.block_until_ready(y_r)
    ref_r = xr[0]
    for i in range(n - 1):
        ref_r = ref_r + xr[i + 1]
    assert jnp.allclose(y_r, ref_r, atol=1e-5, rtol=1e-5)

    # larger tensor exercises the >=4-grid-step / big-block sizing path
    shape_l = (4, 32, 64, 64)  # numel = 524288 -> 4096 rows
    keys_l = jax.random.split(jax.random.PRNGKey(2), n)
    xl = [jax.random.normal(keys_l[i], shape_l, dtype=jnp.float32) for i in range(n)]
    y_l = sum_pallas(xl, w_param)
    jax.block_until_ready(y_l)
    ref_l = xl[0]
    for i in range(n - 1):
        ref_l = ref_l + xl[i + 1] * ww[i]
    assert jnp.allclose(y_l, ref_l, atol=1e-5, rtol=1e-5)

    print("KERNEL_OK")
</pallas_src>

<mosaic_0001>
module attributes {stable_mosaic.version = 11 : i64} {
  func.func @_sum_kernel_weighted(%arg0: i32, %arg1: memref<2xf32, #tpu.memory_space<smem>>, %arg2: memref<8x128xf32, #tpu.memory_space<vmem>>, %arg3: memref<8x128xf32, #tpu.memory_space<vmem>>, %arg4: memref<8x128xf32, #tpu.memory_space<vmem>>, %arg5: memref<8x128xf32, #tpu.memory_space<vmem>>) attributes {dimension_semantics = [#tpu.dimension_semantics<parallel>], iteration_bounds = array<i64: 2>, scalar_prefetch = 1 : i64, scratch_operands = 0 : i64, tpu.core_type = #tpu.core_type<tc>, window_params = [{transform_indices = @transform_0, window_bounds = array<i64: 8, 128>}, {transform_indices = @transform_1, window_bounds = array<i64: 8, 128>}, {transform_indices = @transform_2, window_bounds = array<i64: 8, 128>}, {transform_indices = @transform_3, window_bounds = array<i64: 8, 128>}]} {
    %c0 = arith.constant 0 : index
    %c0_0 = arith.constant 0 : index
    %0 = vector.load %arg2[%c0, %c0_0] : memref<8x128xf32, #tpu.memory_space<vmem>>, vector<8x128xf32>
    %c0_1 = arith.constant 0 : index
    %c0_2 = arith.constant 0 : index
    %1 = vector.load %arg3[%c0_1, %c0_2] : memref<8x128xf32, #tpu.memory_space<vmem>>, vector<8x128xf32>
    %c0_3 = arith.constant 0 : index
    %2 = memref.load %arg1[%c0_3] : memref<2xf32, #tpu.memory_space<smem>>
    %3 = vector.broadcast %2 : f32 to vector<8x128xf32>
    %4 = arith.mulf %1, %3 : vector<8x128xf32>
    %5 = arith.addf %0, %4 : vector<8x128xf32>
    %c0_4 = arith.constant 0 : index
    %c0_5 = arith.constant 0 : index
    %6 = vector.load %arg4[%c0_4, %c0_5] : memref<8x128xf32, #tpu.memory_space<vmem>>, vector<8x128xf32>
    %c1 = arith.constant 1 : index
    %7 = memref.load %arg1[%c1] : memref<2xf32, #tpu.memory_space<smem>>
    %8 = vector.broadcast %7 : f32 to vector<8x128xf32>
    %9 = arith.mulf %6, %8 : vector<8x128xf32>
    %10 = arith.addf %5, %9 : vector<8x128xf32>
    %c0_6 = arith.constant 0 : index
    %c0_7 = arith.constant 0 : index
    %11 = vector.load %arg5[%c0_6, %c0_7] : memref<8x128xf32, #tpu.memory_space<vmem>>, vector<8x128xf32>
    tpu.vector_store %arg5[%c0_6, %c0_7], %10 {strides = array<i32>} : memref<8x128xf32, #tpu.memory_space<vmem>>, vector<8x128xf32>,
    return
  }
  func.func @transform_0(%arg0: i32, %arg1: memref<2xf32, #tpu.memory_space<smem>>) -> (i32, i32) {
    %c0_i32 = arith.constant 0 : i32
    %c0_i32_0 = arith.constant 0 : i32
    return %arg0, %c0_i32 : i32, i32
  }
  func.func @transform_1(%arg0: i32, %arg1: memref<2xf32, #tpu.memory_space<smem>>) -> (i32, i32) {
    %c0_i32 = arith.constant 0 : i32
    %c0_i32_0 = arith.constant 0 : i32
    return %arg0, %c0_i32 : i32, i32
  }
  func.func @transform_2(%arg0: i32, %arg1: memref<2xf32, #tpu.memory_space<smem>>) -> (i32, i32) {
    %c0_i32 = arith.constant 0 : i32
    %c0_i32_0 = arith.constant 0 : i32
    return %arg0, %c0_i32 : i32, i32
  }
  func.func @transform_3(%arg0: i32, %arg1: memref<2xf32, #tpu.memory_space<smem>>) -> (i32, i32) {
    %c0_i32 = arith.constant 0 : i32
    %c0_i32_0 = arith.constant 0 : i32
    return %arg0, %c0_i32 : i32, i32
  }
}

</mosaic_0001>

<llo_original>
// kernel: _sum_pallas_impl.1
$region0: #{_sum_pallas_impl.1}
  #allocation0 [shape = 'u32[]', space=smem, size = 0x4, offset = 0x4, fixed_abs, tag = 'smem constant byte address 0x4 - core index']
  #allocation1 [shape = 'u32[72,128]{1,0:T(1,128)}', space=vmem, size = 0x9000, scoped, tag = 'internal scratch']
  #allocation2 [shape = 's32[1]{0}', space=sflag, size = 0x4, scoped, tag = 'scoped memory for _sum_pallas_impl.1']
  #allocation3 [shape = 'u8[512]{0}', space=smem, size = 0x200, scoped, tag = 'prefetched SMEM operand 0']
  %s0 = inlined_call_operand.vmem [shape: f32[2], index: 0, kind: input, shape index: {}]
  %s1 = inlined_call_operand.vmem [shape: f32[16,128], index: 1, kind: input, shape index: {}]
  %s2 = inlined_call_operand.vmem [shape: f32[16,128], index: 2, kind: input, shape index: {}]
  %s3 = inlined_call_operand.vmem [shape: f32[16,128], index: 3, kind: input, shape index: {}]
  %s4 = inlined_call_operand.vmem [shape: f32[16,128], index: 4, kind: output, shape index: {}]
  %s5 = sld [smem:[#allocation0]]
  $region45: #{_sum_pallas_impl.1} parent=0
    _
  %s7 = ssub.s32 1, %s5
  %s8 = scalar_select 0, %s7, %s5
  %s10 = sshll.u32 %s0, 4
  %s11 = int_to_ptr.vmem [resolvable:$true] %s10
  %13 = dma.vmem_to_smem %s11, 16, [#allocation3], [#allocation2]
  %15 = dma.done [#allocation2], 16
  %16 = sfence
  loop: start=0, step=1, limit=4
  $region2: #{_sum_pallas_impl.1} parent=0 // loop_pre_header
    _
  $region3: #{_sum_pallas_impl.1} parent=0 // loop_header
    %s18 = sphi 0, %s22
    %p19 = scmp.ge.s32.totalorder %s18, 4
    %s28 = sphi 0, %s30
    %s31 = sphi 0, %s28
    %s32 = sphi 0, %s31
    %s48 = sphi 0, %s32
    %s54 = sphi 0, %s56
    %s57 = sphi 0, %s54
    %s58 = sphi 0, %s57
    %s74 = sphi 0, %s58
    %s80 = sphi 0, %s82
    %s83 = sphi 0, %s80
    %s84 = sphi 0, %s83
    %s100 = sphi 0, %s84
    %s106 = sphi 0, %s108
    %s109 = sphi 0, %s106
    %s110 = sphi 0, %s109
    %s126 = sphi 0, %s110
  $region4: #{_sum_pallas_impl.1} parent=0 // loop_header_branch
    %21 = sbr.rel (%p19) target = $region8
  $region5: #{_sum_pallas_impl.1} parent=0 // loop_body
    %s23 = ssub.s32 %s18, 1
    %s24 = ssub.s32 %s18, 2
    %s25 = sadd.s32 %s18, 1
    %s26 = ssub.s32 %s18, %s25
    %p27 = scmp.eq.s32.totalorder %s26, 0
    %s29 = sadd.s32 %s28, 1
    %s30 = scalar_select %p27, %s28, %s29
    %p33 = pneg %p27
    %p34 = scmp.eq.s32.totalorder %s18, 1
    %p35 = por %p33, %p34
    %p36 = scmp.ne.s32.totalorder %s28, %s31
    %p37 = scmp.eq.s32.totalorder %s18, 0
    %p38 = por %p36, %p37
    %p39 = scmp.ne.s32.totalorder %s28, %s31
    %p40 = scmp.eq.s32.totalorder %s23, 1
    %p41 = por %p39, %p40
    %p42 = scmp.ne.s32.totalorder %s31, %s32
    %p43 = scmp.eq.s32.totalorder %s23, 0
    %p44 = por %p42, %p43
    %p45 = scmp.ne.s32.totalorder %s31, %s32
    %p46 = scmp.eq.s32.totalorder %s24, 1
    %p47 = por %p45, %p46
    %p49 = scmp.ne.s32.totalorder %s32, %s48
    %p50 = scmp.eq.s32.totalorder %s24, 0
    %p51 = por %p49, %p50
    %s52 = ssub.s32 %s18, %s25
    %p53 = scmp.eq.s32.totalorder %s52, 0
    %s55 = sadd.s32 %s54, 1
    %s56 = scalar_select %p53, %s54, %s55
    %p59 = pneg %p53
    %p60 = scmp.eq.s32.totalorder %s18, 1
    %p61 = por %p59, %p60
    %p62 = scmp.ne.s32.totalorder %s54, %s57
    %p63 = scmp.eq.s32.totalorder %s18, 0
    %p64 = por %p62, %p63
    %p65 = scmp.ne.s32.totalorder %s54, %s57
    %p66 = scmp.eq.s32.totalorder %s23, 1
    %p67 = por %p65, %p66
    %p68 = scmp.ne.s32.totalorder %s57, %s58
    %p69 = scmp.eq.s32.totalorder %s23, 0
    %p70 = por %p68, %p69
    %p71 = scmp.ne.s32.totalorder %s57, %s58
    %p72 = scmp.eq.s32.totalorder %s24, 1
    %p73 = por %p71, %p72
    %p75 = scmp.ne.s32.totalorder %s58, %s74
    %p76 = scmp.eq.s32.totalorder %s24, 0
    %p77 = por %p75, %p76
    %s78 = ssub.s32 %s18, %s25
    %p79 = scmp.eq.s32.totalorder %s78, 0
    %s81 = sadd.s32 %s80, 1
    %s82 = scalar_select %p79, %s80, %s81
    %p85 = pneg %p79
    %p86 = scmp.eq.s32.totalorder %s18, 1
    %p87 = por %p85, %p86
    %p88 = scmp.ne.s32.totalorder %s80, %s83
    %p89 = scmp.eq.s32.totalorder %s18, 0
    %p90 = por %p88, %p89
    %p91 = scmp.ne.s32.totalorder %s80, %s83
    %p92 = scmp.eq.s32.totalorder %s23, 1
    %p93 = por %p91, %p92
    %p94 = scmp.ne.s32.totalorder %s83, %s84
    %p95 = scmp.eq.s32.totalorder %s23, 0
    %p96 = por %p94, %p95
    %p97 = scmp.ne.s32.totalorder %s83, %s84
    %p98 = scmp.eq.s32.totalorder %s24, 1
    %p99 = por %p97, %p98
    %p101 = scmp.ne.s32.totalorder %s84, %s100
    %p102 = scmp.eq.s32.totalorder %s24, 0
    %p103 = por %p101, %p102
    %s104 = ssub.s32 %s18, %s25
    %p105 = scmp.eq.s32.totalorder %s104, 0
    %s107 = sadd.s32 %s106, 1
    %s108 = scalar_select %p105, %s106, %s107
    %p111 = pneg %p105
    %p112 = scmp.eq.s32.totalorder %s18, 1
    %p113 = por %p111, %p112
    %p114 = scmp.ne.s32.totalorder %s106, %s109
    %p115 = scmp.eq.s32.totalorder %s18, 0
    %p116 = por %p114, %p115
    %p117 = scmp.ne.s32.totalorder %s106, %s109
    %p118 = scmp.eq.s32.totalorder %s23, 1
    %p119 = por %p117, %p118
    %p120 = scmp.ne.s32.totalorder %s109, %s110
    %p121 = scmp.eq.s32.totalorder %s23, 0
    %p122 = por %p120, %p121
    %p123 = scmp.ne.s32.totalorder %s109, %s110
    %p124 = scmp.eq.s32.totalorder %s24, 1
    %p125 = por %p123, %p124
    %p127 = scmp.ne.s32.totalorder %s110, %s126
    %p128 = scmp.eq.s32.totalorder %s24, 0
    %p129 = por %p127, %p128
    %p130 = scmp.le.s32.totalorder 1, %s18
    %p131 = scmp.lt.s32.totalorder %s18, 3
    %p132 = pnand %p130, %p131
    %p133 = pneg %p132
    // Predicated region
    $region9: #{_sum_pallas_impl.1} parent=5 // pred_check
      _
    $region10: #{_sum_pallas_impl.1} parent=5 // pred_check_branch
      %135 = sbr.rel (%p132) target = $region12
    $region11: #{_sum_pallas_impl.1} parent=5 // pred_region
      %s136 = ssub.s32 %s18, 1
    $region12: #{_sum_pallas_impl.1} parent=5 // pred_fallthru
      _
    %p137 = scmp.lt.s32.totalorder %s18, 2
    // Predicated region
    $region13: #{_sum_pallas_impl.1} parent=5 // pred_check
      %p138 = pneg %p137
    $region14: #{_sum_pallas_impl.1} parent=5 // pred_check_branch
      %140 = sbr.rel (%p138) target = $region16
    $region15: #{_sum_pallas_impl.1} parent=5 // pred_region
      // Predicated region
      $region17: #{_sum_pallas_impl.1} parent=15 // pred_check
        %p141 = pneg %p38
      $region18: #{_sum_pallas_impl.1} parent=15 // pred_check_branch
        %143 = sbr.rel (%p141) target = $region20
      $region19: #{_sum_pallas_impl.1} parent=15 // pred_region
        %p144 = scmp.lt.s32.totalorder %s18, 1
        %s145 = scalar_select %p144, %s18, 1
        %s146 = smul.addr %s145, 8
        %s147 = scalar_lea.vmem %s1, %s146
      $region20: #{_sum_pallas_impl.1} parent=15 // pred_fallthru
        _
      // Predicated region
      $region21: #{_sum_pallas_impl.1} parent=15 // pred_check
        %p148 = pneg %p64
      $region22: #{_sum_pallas_impl.1} parent=15 // pred_check_branch
        %150 = sbr.rel (%p148) target = $region24
      $region23: #{_sum_pallas_impl.1} parent=15 // pred_region
        %p151 = scmp.lt.s32.totalorder %s18, 1
        %s152 = scalar_select %p151, %s18, 1
        %s153 = smul.addr %s152, 8
        %s154 = scalar_lea.vmem %s2, %s153
      $region24: #{_sum_pallas_impl.1} parent=15 // pred_fallthru
        _
      // Predicated region
      $region25: #{_sum_pallas_impl.1} parent=15 // pred_check
        %p155 = pneg %p90
      $region26: #{_sum_pallas_impl.1} parent=15 // pred_check_branch
        %157 = sbr.rel (%p155) target = $region28
      $region27: #{_sum_pallas_impl.1} parent=15 // pred_region
        %p158 = scmp.lt.s32.totalorder %s18, 1
        %s159 = scalar_select %p158, %s18, 1
        %s160 = smul.addr %s159, 8
        %s161 = scalar_lea.vmem %s3, %s160
      $region28: #{_sum_pallas_impl.1} parent=15 // pred_fallthru
        _
    $region16: #{_sum_pallas_impl.1} parent=5 // pred_fallthru
      _
    %p162 = scmp.le.s32.totalorder 1, %s18
    %p163 = scmp.lt.s32.totalorder %s18, 3
    %p164 = pnand %p162, %p163
    %p165 = pneg %p164
    // Predicated region
    $region29: #{_sum_pallas_impl.1} parent=5 // pred_check
      _
    $region30: #{_sum_pallas_impl.1} parent=5 // pred_check_branch
      %167 = sbr.rel (%p164) target = $region32
    $region31: #{_sum_pallas_impl.1} parent=5 // pred_region
      %s168 = ssub.s32 %s18, 1
      %p169 = scmp.lt.s32.totalorder %s23, 1
      %s170 = scalar_select %p169, %s23, 1
      %s171 = smul.addr %s170, 8
      %s172 = scalar_lea.vmem %s1, %s171
      %p173 = pneg %p44
      %p174 = pneg %p41
      %p175 = scmp.lt.s32.totalorder %s23, 1
      %s176 = scalar_select %p175, %s23, 1
      %s177 = smul.addr %s176, 8
      %s178 = scalar_lea.vmem %s2, %s177
      %p179 = pneg %p70
      %p180 = pneg %p67
      %p181 = scmp.lt.s32.totalorder %s23, 1
      %s182 = scalar_select %p181, %s23, 1
      %s183 = smul.addr %s182, 8
      %s184 = scalar_lea.vmem %s3, %s183
      %p185 = pneg %p96
      %p186 = pneg %p93
      %p187 = pneg %p122
      %p188 = pneg %p119
      %p189 = scmp.lt.s32.totalorder %s23, 1
      %s190 = scalar_select %p189, %s23, 1
      %s191 = smul.addr %s190, 8
      %s192 = scalar_lea.vmem %s4, %s191
      %p193 = scmp.lt.s32.totalorder %s23, 1
      %s194 = scalar_select %p193, %s23, 1
      %s195 = smul.addr %s194, 8
      %s196 = scalar_lea.vmem %s1, %s195
      %p197 = scmp.lt.s32.totalorder %s23, 1
      %s198 = scalar_select %p197, %s23, 1
      %s199 = smul.addr %s198, 8
      %s200 = scalar_lea.vmem %s2, %s199
      %p201 = scmp.lt.s32.totalorder %s23, 1
      %s202 = scalar_select %p201, %s23, 1
      %s203 = smul.addr %s202, 8
      %s204 = scalar_lea.vmem %s3, %s203
      %p205 = scmp.lt.s32.totalorder %s23, 1
      %s206 = scalar_select %p205, %s23, 1
      %s207 = smul.addr %s206, 8
      %s208 = scalar_lea.vmem %s4, %s207
      %v209 = vld [vmem:[%s196] sm:$0xff]
      %v210 = vld [vmem:[%s200] sm:$0xff]
      %s211 = sld [smem:[#allocation3]]
      %v212 = vstv %s211
      %v213 = vmul.f32 %v210, %v212
      %v214 = vadd.f32 %v209, %v213
      %v215 = vld [vmem:[%s204] sm:$0xff]
      %s216 = sld [smem:[#allocation3 + $0x1]]
      %v217 = vstv %s216
      %v218 = vmul.f32 %v215, %v217
      %v219 = vadd.f32 %v214, %v218
      %220 = vst [vmem:[%s208] sm:$0xff] %v219
      %p221 = scmp.lt.s32.totalorder %s23, 1
      %s222 = scalar_select %p221, %s23, 1
      %s223 = smul.addr %s222, 8
      %s224 = scalar_lea.vmem %s4, %s223
      // Predicated region
      $region33: #{_sum_pallas_impl.1} parent=31 // pred_check
        %p225 = pneg %p119
      $region34: #{_sum_pallas_impl.1} parent=31 // pred_check_branch
        %227 = sbr.rel (%p225) target = $region36
      $region35: #{_sum_pallas_impl.1} parent=31 // pred_region
        _
      $region36: #{_sum_pallas_impl.1} parent=31 // pred_fallthru
        _
    $region32: #{_sum_pallas_impl.1} parent=5 // pred_fallthru
      _
    %p228 = scmp.le.s32.totalorder 2, %s18
    // Predicated region
    $region37: #{_sum_pallas_impl.1} parent=5 // pred_check
      %p229 = pneg %p228
    $region38: #{_sum_pallas_impl.1} parent=5 // pred_check_branch
      %231 = sbr.rel (%p229) target = $region40
    $region39: #{_sum_pallas_impl.1} parent=5 // pred_region
      %s232 = ssub.s32 %s18, 2
      // Predicated region
      $region41: #{_sum_pallas_impl.1} parent=39 // pred_check
        %p233 = pneg %p125
      $region42: #{_sum_pallas_impl.1} parent=39 // pred_check_branch
        %235 = sbr.rel (%p233) target = $region44
      $region43: #{_sum_pallas_impl.1} parent=39 // pred_region
        %p236 = scmp.lt.s32.totalorder %s24, 1
        %s237 = scalar_select %p236, %s24, 1
        %s238 = smul.addr %s237, 8
        %s239 = scalar_lea.vmem %s4, %s238
      $region44: #{_sum_pallas_impl.1} parent=39 // pred_fallthru
        _
    $region40: #{_sum_pallas_impl.1} parent=5 // pred_fallthru
      _
  $region6: #{_sum_pallas_impl.1} parent=0 // loop_footer
    %s22 = sadd.s32 1, %s18
  $region7: #{_sum_pallas_impl.1} parent=0 // loop_footer_branch
    %17 = sbr.rel target = $region3
  $region8: #{_sum_pallas_impl.1} parent=0 // loop_exit
    _

</llo_original>
